<compile_context>
chip_gen: v5e
topology: v5e:2x2
jax: 0.10.0
libtpu: 0.0.40
codegen_flags: <defaults>
</compile_context>

<pallas_src>
import jax
import jax.numpy as jnp
from jax.experimental import pallas as pl
from jax.experimental.pallas import tpu as pltpu


# ---------------------------------------------------------------------------
# Bilinear interpolation matrix (PyTorch F.interpolate, align_corners=False)
# ---------------------------------------------------------------------------
def bilinear_matrix(out_size: int, in_size: int) -> jnp.ndarray:
    """Returns W of shape [out_size, in_size] s.t. out = W @ in (per axis)."""
    scale = in_size / out_size
    src = (jnp.arange(out_size, dtype=jnp.float32) + 0.5) * scale - 0.5
    # Clamping to [0, in-1] reproduces PyTorch's boundary handling for
    # upsampling (both taps collapse onto the edge pixel).
    src = jnp.clip(src, 0.0, float(in_size - 1))
    x0 = jnp.floor(src).astype(jnp.int32)
    x1 = jnp.minimum(x0 + 1, in_size - 1)
    lam = src - x0.astype(jnp.float32)
    oh0 = jax.nn.one_hot(x0, in_size, dtype=jnp.float32)
    oh1 = jax.nn.one_hot(x1, in_size, dtype=jnp.float32)
    return (1.0 - lam)[:, None] * oh0 + lam[:, None] * oh1


# ---------------------------------------------------------------------------
# Pallas kernel: fused (1x1 conv channel-reduce) + separable bilinear upsample
# ---------------------------------------------------------------------------
def depth_probe_kernel(feats_ref, wvec_ref, wh_ref, wwt_ref, bias_ref, out_ref):
    # feats_ref: (h, w, C)  bf16   one sample, channel-last
    # wvec_ref : (1, C)     f32    1x1-conv head weights (whole-array VMEM)
    # wh_ref   : (M, h)     bf16   bilinear rows operator (whole-array VMEM)
    # wwt_ref  : (w, M)     bf16   bilinear cols operator, transposed
    # bias_ref : (1,)       f32    conv bias (SMEM scalar)
    # out_ref  : (M, M)     f32    per-sample output tile
    f = feats_ref[...].astype(jnp.float32)          # (h, w, C)
    v = wvec_ref[...]                               # (1, C) -> broadcasts
    # Channel reduce first (1x1 conv): VPU multiply + XLU lane reduce.
    g = jnp.sum(f * v, axis=-1)                     # (h, w) f32
    # Separable bilinear upsample on the MXU, bf16 operands / f32 accumulate.
    t = jnp.dot(wh_ref[...], g.astype(jnp.bfloat16),
                preferred_element_type=jnp.float32)  # (M, w)
    o = jnp.dot(t.astype(jnp.bfloat16), wwt_ref[...],
                preferred_element_type=jnp.float32)  # (M, M)
    out_ref[...] = (o + bias_ref[0]).astype(out_ref.dtype)


def make_depth_probe_head(h: int, w: int, mask_size: int):
    """Builds the probe head once (operators hoisted out of the call path)."""
    M = mask_size
    wh_bf16 = bilinear_matrix(M, h).astype(jnp.bfloat16)       # (M, h)
    wwt_bf16 = bilinear_matrix(M, w).T.astype(jnp.bfloat16)    # (w, M)

    def head_fn(feats_bhwc, head_w, head_b):
        """feats_bhwc: [B, h, w, C] f32; head_w: Conv2d(C,1,1) weight; head_b: [1]."""
        B, hh, ww_, C = feats_bhwc.shape
        assert (hh, ww_) == (h, w)
        feats_bf16 = feats_bhwc.astype(jnp.bfloat16)
        wvec = head_w.reshape(1, C).astype(jnp.float32)
        bias = head_b.reshape(1).astype(jnp.float32)

        flops = 2 * B * (h * w * C + M * h * w + M * M * w)
        bytes_accessed = (B * h * w * C * 2 + M * h * 2 + w * M * 2
                          + C * 4 + 4 + B * M * M * 4)

        out = pl.pallas_call(
            depth_probe_kernel,
            out_shape=jax.ShapeDtypeStruct((B, M, M), jnp.float32),
            grid_spec=pltpu.PrefetchScalarGridSpec(
                num_scalar_prefetch=0,
                grid=(B,),                                       # one sample/step
                in_specs=[
                    # per-sample channel-last feature block
                    pl.BlockSpec((None, h, w, C), lambda b: (b, 0, 0, 0)),
                    # constant operands: whole-array VMEM (single-buffered)
                    pl.BlockSpec(memory_space=pltpu.MemorySpace.VMEM),  # wvec
                    pl.BlockSpec(memory_space=pltpu.MemorySpace.VMEM),  # wh
                    pl.BlockSpec(memory_space=pltpu.MemorySpace.VMEM),  # wwt
                    pl.BlockSpec(memory_space=pltpu.MemorySpace.SMEM),  # bias
                ],
                out_specs=pl.BlockSpec((None, M, M), lambda b: (b, 0, 0)),
            ),
            compiler_params=pltpu.CompilerParams(
                dimension_semantics=("parallel",)),
            cost_estimate=pl.CostEstimate(
                flops=flops, transcendentals=0, bytes_accessed=bytes_accessed),
        )(feats_bf16, wvec, wh_bf16, wwt_bf16, bias)

        return out.reshape(B, 1, M, M)

    return head_fn


# ---------------------------------------------------------------------------
# Synthetic frozen backbone (stands in for timm backbone + inference_fn)
# ---------------------------------------------------------------------------
# TODO(synk): the real timm backbone / inference_fn is an arbitrary frozen
# network; a deterministic patch-embed projection (channel-last output, the
# natural ViT token layout) is used in its place.
def synthetic_inference_fn(x, patch_w, patch_size, emb_dim):
    # x: [B, C_in, H, W]  ->  feats: [B, H/ps, W/ps, emb_dim]  (channel-last)
    B, C_in, H, W = x.shape
    ps = patch_size
    hp, wp = H // ps, W // ps
    xp = x.reshape(B, C_in, hp, ps, wp, ps)
    xp = xp.transpose(0, 2, 4, 1, 3, 5).reshape(B, hp * wp, C_in * ps * ps)
    feats = jnp.einsum('bpk,ke->bpe', xp, patch_w)           # [B, hp*wp, emb]
    return feats.reshape(B, hp, wp, emb_dim)                 # free token split


# ---------------------------------------------------------------------------
# Full DepthProbe forward
# ---------------------------------------------------------------------------
def depth_probe_forward(x, params, patch_size, emb_dim, head_fn):
    feats = synthetic_inference_fn(x, params['patch_w'], patch_size, emb_dim)
    return head_fn(feats, params['head_w'], params['head_b'])


if __name__ == "__main__":
    # Small, ViT-consistent sizes: 16x16 image, patch 4 -> 4x4 feature grid.
    B, C_in, H, W = 2, 3, 16, 16
    patch_size = 4
    emb_dim = 32
    mask_size = 16
    hp, wp = H // patch_size, W // patch_size

    key = jax.random.PRNGKey(0)
    k_x, k_pw, k_hw, k_hb = jax.random.split(key, 4)

    x = jax.random.normal(k_x, (B, C_in, H, W), dtype=jnp.float32)
    params = {
        # synthetic frozen backbone patch-embed weight
        'patch_w': 0.05 * jax.random.normal(
            k_pw, (C_in * patch_size * patch_size, emb_dim), dtype=jnp.float32),
        # nn.Conv2d(emb_dim, 1, 1) -> weight [1, emb_dim, 1, 1], bias [1]
        'head_w': 0.1 * jax.random.normal(k_hw, (1, emb_dim, 1, 1),
                                          dtype=jnp.float32),
        'head_b': 0.1 * jax.random.normal(k_hb, (1,), dtype=jnp.float32),
    }

    # Operators built once (hoisted); forward is jitted end-to-end.
    head_fn = make_depth_probe_head(hp, wp, mask_size)
    fwd = jax.jit(lambda xx, pp: depth_probe_forward(
        xx, pp, patch_size, emb_dim, head_fn))

    out = fwd(x, params)
    out = jax.block_until_ready(out)
    assert out.shape == (B, 1, mask_size, mask_size)
    assert out.dtype == jnp.float32

    # Plain-JAX f32 reference in the original op order: upsample then 1x1 conv.
    feats = synthetic_inference_fn(x, params['patch_w'], patch_size, emb_dim)
    wh = bilinear_matrix(mask_size, hp)
    ww = bilinear_matrix(mask_size, wp)
    up_ref = jnp.einsum('mi,bijc,nj->bmnc', wh, feats, ww)
    out_ref = (jnp.einsum('bmnc,c->bmn', up_ref,
                          params['head_w'].reshape(-1))
               + params['head_b'][0])[:, None]
    # bf16 operands in the kernel (f32 accumulation) -> loosened tolerance.
    assert jnp.allclose(out, out_ref, atol=2e-2, rtol=2e-2)

    print("KERNEL_OK")
</pallas_src>

<mosaic_0001>
module attributes {stable_mosaic.version = 11 : i64} {
  func.func @depth_probe_kernel(%arg0: i32, %arg1: memref<1x4x4x32xbf16, #tpu.memory_space<vmem>>, %arg2: memref<1x32xf32, #tpu.memory_space<vmem>>, %arg3: memref<16x4xbf16, #tpu.memory_space<vmem>>, %arg4: memref<4x16xbf16, #tpu.memory_space<vmem>>, %arg5: memref<1xf32, #tpu.memory_space<smem>>, %arg6: memref<1x16x16xf32, #tpu.memory_space<vmem>>) attributes {dimension_semantics = [#tpu.dimension_semantics<parallel>], iteration_bounds = array<i64: 2>, scalar_prefetch = 0 : i64, scratch_operands = 0 : i64, tpu.core_type = #tpu.core_type<tc>, window_params = [{transform_indices = @transform_0, window_bounds = array<i64: 1, 4, 4, 32>}, {pipeline_mode = #tpu.pipeline_mode<synchronous>, transform_indices = @transform_1, window_bounds = array<i64: 1, 32>}, {pipeline_mode = #tpu.pipeline_mode<synchronous>, transform_indices = @transform_2, window_bounds = array<i64: 16, 4>}, {pipeline_mode = #tpu.pipeline_mode<synchronous>, transform_indices = @transform_3, window_bounds = array<i64: 4, 16>}, {transform_indices = @transform_4, window_bounds = array<i64: 1>}, {transform_indices = @transform_5, window_bounds = array<i64: 1, 16, 16>}]} {
    %c0 = arith.constant 0 : index
    %c0_0 = arith.constant 0 : index
    %c0_1 = arith.constant 0 : index
    %c0_2 = arith.constant 0 : index
    %0 = vector.load %arg1[%c0, %c0_0, %c0_1, %c0_2] : memref<1x4x4x32xbf16, #tpu.memory_space<vmem>>, vector<1x4x4x32xbf16>
    %1 = vector.shape_cast %0 : vector<1x4x4x32xbf16> to vector<4x4x32xbf16>
    %2 = arith.extf %1 : vector<4x4x32xbf16> to vector<4x4x32xf32>
    %c0_3 = arith.constant 0 : index
    %c0_4 = arith.constant 0 : index
    %3 = vector.load %arg2[%c0_3, %c0_4] : memref<1x32xf32, #tpu.memory_space<vmem>>, vector<1x32xf32>
    %4 = vector.shape_cast %3 : vector<1x32xf32> to vector<1x1x32xf32>
    %5 = vector.broadcast %4 : vector<1x1x32xf32> to vector<4x4x32xf32>
    %6 = arith.mulf %2, %5 : vector<4x4x32xf32>
    %cst = arith.constant dense<0.000000e+00> : vector<4x4xf32>
    %7 = vector.multi_reduction <add>, %6, %cst [2] : vector<4x4x32xf32> to vector<4x4xf32>
    %c0_5 = arith.constant 0 : index
    %c0_6 = arith.constant 0 : index
    %8 = vector.load %arg3[%c0_5, %c0_6] : memref<16x4xbf16, #tpu.memory_space<vmem>>, vector<16x4xbf16>
    %9 = arith.truncf %7 : vector<4x4xf32> to vector<4x4xbf16>
    %cst_7 = arith.constant dense<0.000000e+00> : vector<16x4xf32>
    %10 = tpu.matmul %8, %9, %cst_7 {dimension_numbers = #tpu.dot_dimension_numbers<[1], [0], [0], [1], [0, 0, 1, 1], [], []>} : vector<16x4xbf16>, vector<4x4xbf16>, vector<16x4xf32> -> vector<16x4xf32>
    %11 = arith.truncf %10 : vector<16x4xf32> to vector<16x4xbf16>
    %c0_8 = arith.constant 0 : index
    %c0_9 = arith.constant 0 : index
    %12 = vector.load %arg4[%c0_8, %c0_9] : memref<4x16xbf16, #tpu.memory_space<vmem>>, vector<4x16xbf16>
    %cst_10 = arith.constant dense<0.000000e+00> : vector<16x16xf32>
    %13 = tpu.matmul %11, %12, %cst_10 {dimension_numbers = #tpu.dot_dimension_numbers<[1], [0], [0], [1], [0, 0, 1, 1], [], []>} : vector<16x4xbf16>, vector<4x16xbf16>, vector<16x16xf32> -> vector<16x16xf32>
    %c0_11 = arith.constant 0 : index
    %14 = memref.load %arg5[%c0_11] : memref<1xf32, #tpu.memory_space<smem>>
    %15 = vector.broadcast %14 : f32 to vector<16x16xf32>
    %16 = arith.addf %13, %15 : vector<16x16xf32>
    %c0_12 = arith.constant 0 : index
    %c0_13 = arith.constant 0 : index
    %c0_14 = arith.constant 0 : index
    %17 = vector.load %arg6[%c0_12, %c0_13, %c0_14] : memref<1x16x16xf32, #tpu.memory_space<vmem>>, vector<1x16x16xf32>
    %18 = vector.shape_cast %17 : vector<1x16x16xf32> to vector<16x16xf32>
    %19 = vector.shape_cast %16 : vector<16x16xf32> to vector<1x16x16xf32>
    tpu.vector_store %arg6[%c0_12, %c0_13, %c0_14], %19 {strides = array<i32>} : memref<1x16x16xf32, #tpu.memory_space<vmem>>, vector<1x16x16xf32>,
    return
  }
  func.func @transform_0(%arg0: i32) -> (i32, i32, i32, i32) {
    %c0_i32 = arith.constant 0 : i32
    %c0_i32_0 = arith.constant 0 : i32
    %c0_i32_1 = arith.constant 0 : i32
    %c0_i32_2 = arith.constant 0 : i32
    return %arg0, %c0_i32, %c0_i32_0, %c0_i32_1 : i32, i32, i32, i32
  }
  func.func @transform_1(%arg0: i32) -> (i32, i32) {
    %c0_i32 = arith.constant 0 : i32
    %c0_i32_0 = arith.constant 0 : i32
    %c0_i32_1 = arith.constant 0 : i32
    return %c0_i32, %c0_i32_0 : i32, i32
  }
  func.func @transform_2(%arg0: i32) -> (i32, i32) {
    %c0_i32 = arith.constant 0 : i32
    %c0_i32_0 = arith.constant 0 : i32
    %c0_i32_1 = arith.constant 0 : i32
    return %c0_i32, %c0_i32_0 : i32, i32
  }
  func.func @transform_3(%arg0: i32) -> (i32, i32) {
    %c0_i32 = arith.constant 0 : i32
    %c0_i32_0 = arith.constant 0 : i32
    %c0_i32_1 = arith.constant 0 : i32
    return %c0_i32, %c0_i32_0 : i32, i32
  }
  func.func @transform_4(%arg0: i32) -> i32 {
    %c0_i32 = arith.constant 0 : i32
    %c0_i32_0 = arith.constant 0 : i32
    return %c0_i32 : i32
  }
  func.func @transform_5(%arg0: i32) -> (i32, i32, i32) {
    %c0_i32 = arith.constant 0 : i32
    %c0_i32_0 = arith.constant 0 : i32
    %c0_i32_1 = arith.constant 0 : i32
    return %arg0, %c0_i32, %c0_i32_0 : i32, i32, i32
  }
}

</mosaic_0001>

<llo_original>
// kernel: _lambda_.1
$region0: #{_lambda_.1}
  #allocation0 [shape = 'u32[]', space=smem, size = 0x4, offset = 0x4, fixed_abs, tag = 'smem constant byte address 0x4 - core index']
  #allocation1 [shape = 'u32[72,128]{1,0:T(1,128)}', space=vmem, size = 0x9000, scoped, tag = 'internal scratch']
  #allocation2 [shape = 'f32[1]{0:T(128)S(6)}', space=smem, size = 0x200, scoped, tag = 'scoped memory for _lambda_.1']
  %s0 = inlined_call_operand.vmem [shape: bf16[2,4,4,32], index: 0, kind: input, shape index: {}]
  %s1 = inlined_call_operand.vmem [shape: f32[1,32], index: 1, kind: input, shape index: {}]
  %s2 = inlined_call_operand.vmem [shape: bf16[16,4], index: 2, kind: input, shape index: {}]
  %s3 = inlined_call_operand.vmem [shape: bf16[4,16], index: 3, kind: input, shape index: {}]
  %s4 = inlined_call_operand.<no memory space> [shape: f32[1], index: 4, kind: input, shape index: {}]
  %s5 = inlined_call_operand.hbm [shape: f32[2,16,16], index: 5, kind: output, shape index: {}]
  %s6 = sld [smem:[#allocation0]]
  $region53: #{_lambda_.1} parent=0
    _
  %s8 = ssub.s32 1, %s6
  %s9 = scalar_select 0, %s8, %s6
  %10 = sst [smem:[#allocation2]] %s4
  $region1: #{_lambda_.1} parent=0
    #allocation3 [shape = 'u8[16384]{0}', space=vmem, size = 0x4000, scoped, tag = 'output window, operand 0']
    #allocation4 [shape = 's32[2]{0}', space=sflag, size = 0x8, scoped, tag = 'scoped memory for _lambda_.1']
    %11 = vsyncpa [#allocation4], 0
    %s12 = scalar_lea.sflag [#allocation4], 1
    %13 = vsyncpa %s12, 0
    loop: start=0, step=1, limit=4
    $region2: #{_lambda_.1} parent=1 // loop_pre_header
      _
    $region3: #{_lambda_.1} parent=1 // loop_header
      %s15 = sphi 0, %s19
      %p16 = scmp.ge.s32.totalorder %s15, 4
      %s25 = sphi 0, %s27
      %s28 = sphi 0, %s25
      %s29 = sphi 0, %s28
      %s45 = sphi 0, %s29
      %s49 = sphi 0, %s49
      %s51 = sphi 0, %s49
      %s52 = sphi 0, %s51
      %s66 = sphi 0, %s52
      %s70 = sphi 0, %s70
      %s72 = sphi 0, %s70
      %s73 = sphi 0, %s72
      %s87 = sphi 0, %s73
      %s91 = sphi 0, %s91
      %s93 = sphi 0, %s91
      %s94 = sphi 0, %s93
      %s108 = sphi 0, %s94
      %s112 = sphi 0, %s112
      %s114 = sphi 0, %s112
      %s115 = sphi 0, %s114
      %s129 = sphi 0, %s115
      %s135 = sphi 0, %s137
      %s138 = sphi 0, %s135
      %s139 = sphi 0, %s138
      %s155 = sphi 0, %s139
    $region4: #{_lambda_.1} parent=1 // loop_header_branch
      %18 = sbr.rel (%p16) target = $region8
    $region5: #{_lambda_.1} parent=1 // loop_body
      %s20 = ssub.s32 %s15, 1
      %s21 = ssub.s32 %s15, 2
      %s22 = sadd.s32 %s15, 1
      %s23 = ssub.s32 %s15, %s22
      %p24 = scmp.eq.s32.totalorder %s23, 0
      %s26 = sadd.s32 %s25, 1
      %s27 = scalar_select %p24, %s25, %s26
      %p30 = pneg %p24
      %p31 = scmp.eq.s32.totalorder %s15, 1
      %p32 = por %p30, %p31
      %p33 = scmp.ne.s32.totalorder %s25, %s28
      %p34 = scmp.eq.s32.totalorder %s15, 0
      %p35 = por %p33, %p34
      %p36 = scmp.ne.s32.totalorder %s25, %s28
      %p37 = scmp.eq.s32.totalorder %s20, 1
      %p38 = por %p36, %p37
      %p39 = scmp.ne.s32.totalorder %s28, %s29
      %p40 = scmp.eq.s32.totalorder %s20, 0
      %p41 = por %p39, %p40
      %p42 = scmp.ne.s32.totalorder %s28, %s29
      %p43 = scmp.eq.s32.totalorder %s21, 1
      %p44 = por %p42, %p43
      %p46 = scmp.ne.s32.totalorder %s29, %s45
      %p47 = scmp.eq.s32.totalorder %s21, 0
      %p48 = por %p46, %p47
      %s50 = sadd.s32 %s49, 1
      %p53 = scmp.eq.s32.totalorder %s15, 1
      %p54 = scmp.ne.s32.totalorder %s49, %s51
      %p55 = scmp.eq.s32.totalorder %s15, 0
      %p56 = por %p54, %p55
      %p57 = scmp.ne.s32.totalorder %s49, %s51
      %p58 = scmp.eq.s32.totalorder %s20, 1
      %p59 = por %p57, %p58
      %p60 = scmp.ne.s32.totalorder %s51, %s52
      %p61 = scmp.eq.s32.totalorder %s20, 0
      %p62 = por %p60, %p61
      %p63 = scmp.ne.s32.totalorder %s51, %s52
      %p64 = scmp.eq.s32.totalorder %s21, 1
      %p65 = por %p63, %p64
      %p67 = scmp.ne.s32.totalorder %s52, %s66
      %p68 = scmp.eq.s32.totalorder %s21, 0
      %p69 = por %p67, %p68
      %s71 = sadd.s32 %s70, 1
      %p74 = scmp.eq.s32.totalorder %s15, 1
      %p75 = scmp.ne.s32.totalorder %s70, %s72
      %p76 = scmp.eq.s32.totalorder %s15, 0
      %p77 = por %p75, %p76
      %p78 = scmp.ne.s32.totalorder %s70, %s72
      %p79 = scmp.eq.s32.totalorder %s20, 1
      %p80 = por %p78, %p79
      %p81 = scmp.ne.s32.totalorder %s72, %s73
      %p82 = scmp.eq.s32.totalorder %s20, 0
      %p83 = por %p81, %p82
      %p84 = scmp.ne.s32.totalorder %s72, %s73
      %p85 = scmp.eq.s32.totalorder %s21, 1
      %p86 = por %p84, %p85
      %p88 = scmp.ne.s32.totalorder %s73, %s87
      %p89 = scmp.eq.s32.totalorder %s21, 0
      %p90 = por %p88, %p89
      %s92 = sadd.s32 %s91, 1
      %p95 = scmp.eq.s32.totalorder %s15, 1
      %p96 = scmp.ne.s32.totalorder %s91, %s93
      %p97 = scmp.eq.s32.totalorder %s15, 0
      %p98 = por %p96, %p97
      %p99 = scmp.ne.s32.totalorder %s91, %s93
      %p100 = scmp.eq.s32.totalorder %s20, 1
      %p101 = por %p99, %p100
      %p102 = scmp.ne.s32.totalorder %s93, %s94
      %p103 = scmp.eq.s32.totalorder %s20, 0
      %p104 = por %p102, %p103
      %p105 = scmp.ne.s32.totalorder %s93, %s94
      %p106 = scmp.eq.s32.totalorder %s21, 1
      %p107 = por %p105, %p106
      %p109 = scmp.ne.s32.totalorder %s94, %s108
      %p110 = scmp.eq.s32.totalorder %s21, 0
      %p111 = por %p109, %p110
      %s113 = sadd.s32 %s112, 1
      %p116 = scmp.eq.s32.totalorder %s15, 1
      %p117 = scmp.ne.s32.totalorder %s112, %s114
      %p118 = scmp.eq.s32.totalorder %s15, 0
      %p119 = por %p117, %p118
      %p120 = scmp.ne.s32.totalorder %s112, %s114
      %p121 = scmp.eq.s32.totalorder %s20, 1
      %p122 = por %p120, %p121
      %p123 = scmp.ne.s32.totalorder %s114, %s115
      %p124 = scmp.eq.s32.totalorder %s20, 0
      %p125 = por %p123, %p124
      %p126 = scmp.ne.s32.totalorder %s114, %s115
      %p127 = scmp.eq.s32.totalorder %s21, 1
      %p128 = por %p126, %p127
      %p130 = scmp.ne.s32.totalorder %s115, %s129
      %p131 = scmp.eq.s32.totalorder %s21, 0
      %p132 = por %p130, %p131
      %s133 = ssub.s32 %s15, %s22
      %p134 = scmp.eq.s32.totalorder %s133, 0
      %s136 = sadd.s32 %s135, 1
      %s137 = scalar_select %p134, %s135, %s136
      %p140 = pneg %p134
      %p141 = scmp.eq.s32.totalorder %s15, 1
      %p142 = por %p140, %p141
      %p143 = scmp.ne.s32.totalorder %s135, %s138
      %p144 = scmp.eq.s32.totalorder %s15, 0
      %p145 = por %p143, %p144
      %p146 = scmp.ne.s32.totalorder %s135, %s138
      %p147 = scmp.eq.s32.totalorder %s20, 1
      %p148 = por %p146, %p147
      %p149 = scmp.ne.s32.totalorder %s138, %s139
      %p150 = scmp.eq.s32.totalorder %s20, 0
      %p151 = por %p149, %p150
      %p152 = scmp.ne.s32.totalorder %s138, %s139
      %p153 = scmp.eq.s32.totalorder %s21, 1
      %p154 = por %p152, %p153
      %p156 = scmp.ne.s32.totalorder %s139, %s155
      %p157 = scmp.eq.s32.totalorder %s21, 0
      %p158 = por %p156, %p157
      %p159 = scmp.le.s32.totalorder 1, %s15
      %p160 = scmp.lt.s32.totalorder %s15, 3
      %p161 = pnand %p159, %p160
      %p162 = pneg %p161
      // Predicated region
      $region9: #{_lambda_.1} parent=5 // pred_check
        _
      $region10: #{_lambda_.1} parent=5 // pred_check_branch
        %164 = sbr.rel (%p161) target = $region12
      $region11: #{_lambda_.1} parent=5 // pred_region
        %s165 = ssub.s32 %s15, 1
        // Predicated region
        $region13: #{_lambda_.1} parent=11 // pred_check
          %p166 = pneg %p62
        $region14: #{_lambda_.1} parent=11 // pred_check_branch
          %168 = sbr.rel (%p166) target = $region16
        $region15: #{_lambda_.1} parent=11 // pred_region
          _
        $region16: #{_lambda_.1} parent=11 // pred_fallthru
          _
        // Predicated region
        $region17: #{_lambda_.1} parent=11 // pred_check
          %p169 = pneg %p83
        $region18: #{_lambda_.1} parent=11 // pred_check_branch
          %171 = sbr.rel (%p169) target = $region20
        $region19: #{_lambda_.1} parent=11 // pred_region
          _
        $region20: #{_lambda_.1} parent=11 // pred_fallthru
          _
        // Predicated region
        $region21: #{_lambda_.1} parent=11 // pred_check
          %p172 = pneg %p104
        $region22: #{_lambda_.1} parent=11 // pred_check_branch
          %174 = sbr.rel (%p172) target = $region24
        $region23: #{_lambda_.1} parent=11 // pred_region
          _
        $region24: #{_lambda_.1} parent=11 // pred_fallthru
          _
        // Predicated region
        $region25: #{_lambda_.1} parent=11 // pred_check
          %p175 = pneg %p125
        $region26: #{_lambda_.1} parent=11 // pred_check_branch
          %177 = sbr.rel (%p175) target = $region28
        $region27: #{_lambda_.1} parent=11 // pred_region
          _
        $region28: #{_lambda_.1} parent=11 // pred_fallthru
          _
      $region12: #{_lambda_.1} parent=5 // pred_fallthru
        _
      %p178 = scmp.lt.s32.totalorder %s15, 2
      // Predicated region
      $region29: #{_lambda_.1} parent=5 // pred_check
        %p179 = pneg %p178
      $region30: #{_lambda_.1} parent=5 // pred_check_branch
        %181 = sbr.rel (%p179) target = $region32
      $region31: #{_lambda_.1} parent=5 // pred_region
        // Predicated region
        $region33: #{_lambda_.1} parent=31 // pred_check
          %p182 = pneg %p35
        $region34: #{_lambda_.1} parent=31 // pred_check_branch
          %184 = sbr.rel (%p182) target = $region36
        $region35: #{_lambda_.1} parent=31 // pred_region
          %p185 = scmp.lt.s32.totalorder %s15, 1
          %s186 = scalar_select %p185, %s15, 1
          %s187 = smul.addr %s186, 4
          %s188 = smul.addr %s187, 2
          %s189 = scalar_lea.vmem %s0, %s188
        $region36: #{_lambda_.1} parent=31 // pred_fallthru
          _
      $region32: #{_lambda_.1} parent=5 // pred_fallthru
        _
      %p190 = scmp.le.s32.totalorder 1, %s15
      %p191 = scmp.lt.s32.totalorder %s15, 3
      %p192 = pnand %p190, %p191
      %p193 = pneg %p192
      // Predicated region
      $region37: #{_lambda_.1} parent=5 // pred_check
        _
      $region38: #{_lambda_.1} parent=5 // pred_check_branch
        %195 = sbr.rel (%p192) target = $region40
      $region39: #{_lambda_.1} parent=5 // pred_region
        %s196 = ssub.s32 %s15, 1
        %p197 = scmp.lt.s32.totalorder %s20, 1
        %s198 = scalar_select %p197, %s20, 1
        %s199 = smul.addr %s198, 4
        %s200 = smul.addr %s199, 2
        %s201 = scalar_lea.vmem %s0, %s200
        %p202 = pneg %p41
        %p203 = pneg %p38
        %p204 = pneg %p62
        %p205 = pneg %p59
        %p206 = pneg %p83
        %p207 = pneg %p80
        %p208 = pneg %p104
        %p209 = pneg %p101
        %p210 = pneg %p125
        %p211 = pneg %p122
        %p212 = pneg %p151
        %p213 = pneg %p148
        %s214 = sand.u32 %s138, 1
        %s215 = scalar_lea.sflag [#allocation4], %s214
        %s216 = sand.u32 %s138, 1
        %s217 = smul.addr %s216, 16
        %s218 = scalar_lea.vmem [#allocation3], %s217
        %p219 = scmp.lt.s32.totalorder %s20, 1
        %s220 = scalar_select %p219, %s20, 1
        %s221 = smul.addr %s220, 4
        %s222 = smul.addr %s221, 2
        %s223 = scalar_lea.vmem %s0, %s222
        %v225 = vld [vmem:[%s223] sm:$0x3]
        %v226 = vld [vmem:[%s223 + $0x2] sm:$0x3]
        %v227 = vld [vmem:[%s223 + $0x4] sm:$0x3]
        %v228 = vld [vmem:[%s223 + $0x6] sm:$0x3]
        %v229 = vunpack.c.l.bf16 %v225
        %v230 = vunpack.c.l.bf16 %v226
        %v231 = vunpack.c.l.bf16 %v227
        %v232 = vunpack.c.l.bf16 %v228
        %v233 = vld [vmem:[%s1] sm:$0x1]
        %v235 = vperm.slane %v233, 0
        %v237 = vmul.f32 %v229, %v235
        %v238 = vmul.f32 %v230, %v235
        %v239 = vmul.f32 %v231, %v235
        %v240 = vmul.f32 %v232, %v235
        %vm241 = vcmask 257024
        %v242 = vsel %vm241, %v237, 0.0
        %243 = vadd.xlane.f32.xlu0 %v242
        %v244 = vpop.xlane.xlu0 %243
        %v245 = vsel %vm241, %v238, 0.0
        %246 = vadd.xlane.f32.xlu0 %v245
        %v247 = vpop.xlane.xlu0 %246
        %v248 = vsel %vm241, %v239, 0.0
        %249 = vadd.xlane.f32.xlu0 %v248
        %v250 = vpop.xlane.xlu0 %249
        %v251 = vsel %vm241, %v240, 0.0
        %252 = vadd.xlane.f32.xlu0 %v251
        %v253 = vpop.xlane.xlu0 %252
        %v254 = vld [vmem:[%s2] sm:$0xf]
        %v255 = vld [vmem:[%s2 + $0x4] sm:$0xf]
        %v256 = vpack.c.bf16 %v244, %v244
        %v257 = vpack.c.bf16 %v247, %v247
        %v258 = vpack.c.bf16 %v250, %v250
        %v259 = vpack.c.bf16 %v253, %v253
        %v262 = vunpack.c.l.b16 %v254
        %v263 = vunpack.c.l.b16 %v255
        %v264 = vpack.c.b16 %v263, %v262
        %v269 = vunpack.c.l.b16 %v256
        %v270 = vunpack.c.l.b16 %v257
        %v271 = vunpack.c.l.b16 %v258
        %v272 = vunpack.c.l.b16 %v259
        %v273 = vlaneseq
        %v274 = vand.u32 %v273, 127
        %v275 = vperm.slane %v269, %v274
        %v276 = vperm.slane %v270, %v274
        %v277 = vperm.slane %v271, %v274
        %v278 = vperm.slane %v272, %v274
        %vm279 = vcmask 1041409
        %v280 = vsel %vm279, %v276, %v275
        %vm281 = vcmask 1042434
        %v282 = vsel %vm281, %v277, %v280
        %vm283 = vcmask 1043459
        %v284 = vsel %vm283, %v278, %v282
        %v285 = vpack.c.b16 %v284, %v284
        %vm286 = vcmask 31744
        %v288 = vsel %vm286, %v264, 0
        %vm290 = vcmask 1041408
        %v292 = vsel %vm290, %v285, 0
        %294 = vmatpush.bf16.msra.mxu0 0
        %295 = vmatpush.bf16.msra.mxu0 0
        %296 = vmatpush.bf16.msra.mxu0 0
        %297 = vmatpush.bf16.msra.mxu0 0
        %298 = vmatpush.bf16.msra.mxu0 0
        %299 = vmatpush.bf16.msra.mxu0 0
        %300 = vmatpush.bf16.msra.mxu0 0
        %301 = vmatpush.bf16.msra.mxu0 %v292
        %302 = vmatmul.bf16.gmra.mxu0 %v288
        %v303 = vpop.f32.mrf.mxu0
        %v304 = vadd.f32 0.0, %v303
        %v305 = vpop.f32.mrf.mxu0
        %v306 = vadd.f32 0.0, %v305
        %307 = vdwg.mxu0
        %v308 = vpack.c.bf16 %v306, %v304
        %v309 = vld [vmem:[%s3] sm:$0x3]
        %s310 = sld [smem:[#allocation2]]
        %v311 = vstv %s310
        %v313 = vsel %vm286, %v308, 0
        %v316 = vsel %vm290, %v309, 0
        %318 = vmatpush.bf16.msra.mxu0 0
        %319 = vmatpush.bf16.msra.mxu0 0
        %320 = vmatpush.bf16.msra.mxu0 0
        %321 = vmatpush.bf16.msra.mxu0 0
        %322 = vmatpush.bf16.msra.mxu0 0
        %323 = vmatpush.bf16.msra.mxu0 0
        %324 = vmatpush.bf16.msra.mxu0 0
        %325 = vmatpush.bf16.msra.mxu0 %v316
        %326 = vmatmul.bf16.gmra.mxu0 %v313
        %v327 = vpop.f32.mrf.mxu0
        %v328 = vadd.f32 %v311, %v327
        %v329 = vpop.f32.mrf.mxu0
        %v330 = vadd.f32 %v311, %v329
        %331 = vdwg.mxu0
        %vm332 = vcmask 130048
        %333 = vst.msk [vmem:[%s218] sm:$0xff] %vm332, %v328
        %334 = vst.msk [vmem:[%s218 + $0x8] sm:$0xff] %vm332, %v330
        %s335 = sand.u32 %s138, 1
        %s336 = scalar_lea.sflag [#allocation4], %s335
        %s337 = sand.u32 %s138, 1
        %s338 = smul.addr %s337, 16
        %s339 = scalar_lea.vmem [#allocation3], %s338
        // Predicated region
        $region41: #{_lambda_.1} parent=39 // pred_check
          %p340 = pneg %p148
        $region42: #{_lambda_.1} parent=39 // pred_check_branch
          %342 = sbr.rel (%p340) target = $region44
        $region43: #{_lambda_.1} parent=39 // pred_region
          %344 = vsyncadd %s336, 0
          %s345 = smul.addr %s20, 2
          %s346 = smul.addr %s345, 8
          %s347 = scalar_lea.hbm %s5, %s346
          %s348 = sshll.u32 %s339, 4
          %s349 = int_to_ptr.vmem [resolvable:$true] %s348
          %s350 = sshll.u32 %s347, 4
          %s351 = int_to_ptr.hbm [resolvable:$true] %s350
          %356 = dma.vmem_to_hbm [thread:$0]  %s349, 256, %s351, %s336, 128, 128, 8
        $region44: #{_lambda_.1} parent=39 // pred_fallthru
          _
      $region40: #{_lambda_.1} parent=5 // pred_fallthru
        _
      %p357 = scmp.le.s32.totalorder 2, %s15
      // Predicated region
      $region45: #{_lambda_.1} parent=5 // pred_check
        %p358 = pneg %p357
      $region46: #{_lambda_.1} parent=5 // pred_check_branch
        %360 = sbr.rel (%p358) target = $region48
      $region47: #{_lambda_.1} parent=5 // pred_region
        %s361 = ssub.s32 %s15, 2
        // Predicated region
        $region49: #{_lambda_.1} parent=47 // pred_check
          %p362 = pneg %p154
        $region50: #{_lambda_.1} parent=47 // pred_check_branch
          %364 = sbr.rel (%p362) target = $region52
        $region51: #{_lambda_.1} parent=47 // pred_region
          %s365 = sand.u32 %s139, 1
          %s366 = scalar_lea.sflag [#allocation4], %s365
          %s367 = sand.u32 %s139, 1
          %s368 = smul.addr %s367, 16
          %s369 = scalar_lea.vmem [#allocation3], %s368
          %371 = dma.done %s366, 256
        $region52: #{_lambda_.1} parent=47 // pred_fallthru
          _
      $region48: #{_lambda_.1} parent=5 // pred_fallthru
        _
    $region6: #{_lambda_.1} parent=1 // loop_footer
      %s19 = sadd.s32 1, %s15
    $region7: #{_lambda_.1} parent=1 // loop_footer_branch
      %14 = sbr.rel target = $region3
    $region8: #{_lambda_.1} parent=1 // loop_exit
      _
    %372 = vsyncpa [#allocation4], 1
    %s373 = scalar_lea.sflag [#allocation4], 1
    %374 = vsyncpa %s373, 1

</llo_original>
